<compile_context>
chip_gen: v7x
topology: tpu7x:2x2x1
jax: 0.10.0
libtpu: 0.0.40
codegen_flags: <defaults>
</compile_context>

<pallas_src>
import functools

import jax
import jax.numpy as jnp
from jax import lax
from jax.experimental import pallas as pl
from jax.experimental.pallas import tpu as pltpu

_F32 = jnp.float32
_HIGHEST = lax.Precision.HIGHEST
_VMEM_LIMIT_BYTES = 32 * 1024 * 1024   # safe scoped-VMEM cap on v5e/v6e/v7x
_MAX_TM = 32768                        # lane-tile cap (keeps buffers a few MiB)


def _round_up(a, b):
    return (a + b - 1) // b * b


def _default_stat_splits():
    """2 stat splits (one per TensorCore) on v7x-class chips, else 1."""
    try:
        kind = jax.devices()[0].device_kind.lower()
    except Exception:
        return 1
    return 2 if ("v7" in kind or "7x" in kind) else 1


def _choose_tiling(M, ic, oc, stat_splits):
    """Pick (tm, splits, M_pad, inner, n_tiles): big lane tiles, VMEM-capped."""
    splits = max(1, int(stat_splits))
    # Rough per-point f32 footprint: x (double-buffered), out (double-buffered),
    # plus in-kernel intermediates (y1/a1 and y2/h2/ys/res).
    bytes_per_point = 4 * (2 * ic + 2 * oc + 2 * ic + 5 * oc + 4)
    cap = max(512, (_VMEM_LIMIT_BYTES * 3 // 4) // bytes_per_point // 512 * 512)
    # ~4 inner tiles per split keeps pipelining + both v7x TCs busy.
    tm = _round_up(max(1, pl.cdiv(M, splits * 4)), 512)
    tm = min(tm, cap, _MAX_TM)
    tm = max(128, min(tm, _round_up(M, 128)))
    tm = _round_up(tm, 128)
    if pl.cdiv(M, tm) < splits:        # not enough tiles to feed every split
        splits = 1
    M_pad = _round_up(M, tm * splits)
    inner = M_pad // (tm * splits)
    n_tiles = M_pad // tm
    return tm, splits, M_pad, inner, n_tiles


# ----------------------------------------------------------------------------
# Sweep A: accumulate sum(x) and Gram(x) = x @ x^T (MXU).  Zero-padded tail
# columns contribute nothing here (x == 0 there).
# ----------------------------------------------------------------------------
def _stats_x_kernel(xt_ref, xsum_ref, gram_ref):
    @pl.when(pl.program_id(1) == 0)
    def _():
        xsum_ref[...] = jnp.zeros_like(xsum_ref)
        gram_ref[...] = jnp.zeros_like(gram_ref)

    x = xt_ref[...]                                           # (ic, tm) f32
    xsum_ref[...] += jnp.sum(x, axis=1, keepdims=True)[None]
    gram_ref[...] += lax.dot_general(
        x, x, (((1,), (1,)), ((), ())),
        preferred_element_type=jnp.float32)[None]


# ----------------------------------------------------------------------------
# Sweep B: recompute a1 = relu(BN1(W1 x)) from folded scale/shift, accumulate
# sum(a1) and Gram(a1) = a1 @ a1^T.  Padded tail columns (x == 0) would give
# a1 = relu(sh1) != 0, so they are masked out of the statistics.
# ----------------------------------------------------------------------------
def _stats_a1_kernel(xt_ref, w1_ref, sc1_ref, sh1_ref, a1sum_ref, gram_ref,
                     *, tm, m_total):
    p, i = pl.program_id(0), pl.program_id(1)

    @pl.when(i == 0)
    def _():
        a1sum_ref[...] = jnp.zeros_like(a1sum_ref)
        gram_ref[...] = jnp.zeros_like(gram_ref)

    x = xt_ref[...]                                           # (ic, tm)
    y1 = jnp.dot(w1_ref[...], x, preferred_element_type=jnp.float32)
    a1 = jnp.maximum(sc1_ref[...] * y1 + sh1_ref[...], 0.0)

    start = (p * pl.num_programs(1) + i) * tm                 # global column
    col = start + lax.broadcasted_iota(jnp.int32, a1.shape, 1)
    a1 = jnp.where(col < m_total, a1, 0.0)                    # mask padded tail

    a1sum_ref[...] += jnp.sum(a1, axis=1, keepdims=True)[None]
    gram_ref[...] += lax.dot_general(
        a1, a1, (((1,), (1,)), ((), ())),
        preferred_element_type=jnp.float32)[None]


# ----------------------------------------------------------------------------
# Sweep C: full recompute + folded BN + residual add + final relu.  Only the
# final (oc, tm) tile is written (lane-dense, tm multiple of 128).
# ----------------------------------------------------------------------------
def _final_kernel(xt_ref, w1_ref, sc1_ref, sh1_ref, w2_ref, sc2_ref, sh2_ref,
                  *rest, has_shortcut):
    if has_shortcut:
        ws_ref, scs_ref, shs_ref, o_ref = rest
    else:
        (o_ref,) = rest

    x = xt_ref[...]                                           # (ic, tm)
    y1 = jnp.dot(w1_ref[...], x, preferred_element_type=jnp.float32)
    a1 = jnp.maximum(sc1_ref[...] * y1 + sh1_ref[...], 0.0)
    y2 = jnp.dot(w2_ref[...], a1, preferred_element_type=jnp.float32)
    h2 = sc2_ref[...] * y2 + sh2_ref[...]
    if has_shortcut:
        ys = jnp.dot(ws_ref[...], x, preferred_element_type=jnp.float32)
        res = scs_ref[...] * ys + shs_ref[...]
    else:
        res = x                                               # ic == oc here
    o_ref[...] = jnp.maximum(res + h2, 0.0).astype(o_ref.dtype)


# ----------------------------------------------------------------------------
# BN fold glue: y = W @ u  =>  mean_y = W @ mean(u),  E[y^2] = diag(W E[uu^T] W^T)
# One-pass var = E[y^2] - mean^2 can cancel for channels with large means; it is
# clamped at 0 (documented tolerance of the fused formulation).
# ----------------------------------------------------------------------------
def _fold_bn(w, gamma, beta, u_sum, u_gram, count, eps):
    mean = jnp.matmul(w, u_sum, precision=_HIGHEST)[:, 0] / count
    ey2 = jnp.einsum("oi,ij,oj->o", w, u_gram, w, precision=_HIGHEST) / count
    var = jnp.maximum(ey2 - mean * mean, 0.0)
    inv = lax.rsqrt(var + eps)
    scale = gamma * inv
    shift = beta - mean * scale
    return scale[:, None].astype(_F32), shift[:, None].astype(_F32)


# ----------------------------------------------------------------------------
# Channels-first core: x_cm (ic, M) -> (oc, M).  Stack ResSMLP blocks in this
# layout so the (B,N,C) transpose is paid once per network, not per block.
# ----------------------------------------------------------------------------
def res_smlp_forward_cm(x_cm, w1, g1, b1, w2, g2, b2, ws=None, gs=None, bs=None,
                        *, eps=1e-5, stat_splits=None):
    ic, M = x_cm.shape
    oc = w2.shape[0]
    has_shortcut = (ic != oc)
    if has_shortcut:
        assert ws is not None and gs is not None and bs is not None
    if stat_splits is None:
        stat_splits = _default_stat_splits()

    tm, splits, M_pad, inner, n_tiles = _choose_tiling(M, ic, oc, stat_splits)

    xt = x_cm.astype(_F32)
    if M_pad > M:
        xt = jnp.pad(xt, ((0, 0), (0, M_pad - M)))            # zero tail columns

    w1 = w1.astype(_F32); w2 = w2.astype(_F32)
    g1 = g1.astype(_F32); b1 = b1.astype(_F32)
    g2 = g2.astype(_F32); b2 = b2.astype(_F32)
    Mf = jnp.asarray(M, _F32)

    x_spec = pl.BlockSpec((ic, tm), lambda p, i: (0, p * inner + i))
    const2 = lambda shape: pl.BlockSpec(shape, lambda p, i: (0, 0))
    acc_spec = lambda r, c: pl.BlockSpec((1, r, c), lambda p, i: (p, 0, 0))
    stats_params = pltpu.CompilerParams(
        dimension_semantics=("parallel", "arbitrary"),
        vmem_limit_bytes=_VMEM_LIMIT_BYTES)

    # ---- Sweep A: sum(x), Gram(x) -> BN1 (and shortcut BN) statistics ------
    xsum_p, xgram_p = pl.pallas_call(
        _stats_x_kernel,
        out_shape=(jax.ShapeDtypeStruct((splits, ic, 1), _F32),
                   jax.ShapeDtypeStruct((splits, ic, ic), _F32)),
        grid_spec=pltpu.PrefetchScalarGridSpec(
            num_scalar_prefetch=0, grid=(splits, inner),
            in_specs=[x_spec],
            out_specs=[acc_spec(ic, 1), acc_spec(ic, ic)]),
        compiler_params=stats_params,
    )(xt)
    x_sum = jnp.sum(xsum_p, axis=0)                            # (ic, 1)
    x_gram = jnp.sum(xgram_p, axis=0)                          # (ic, ic)

    sc1, sh1 = _fold_bn(w1, g1, b1, x_sum, x_gram, Mf, eps)
    if has_shortcut:
        ws = ws.astype(_F32); gs = gs.astype(_F32); bs = bs.astype(_F32)
        scs, shs = _fold_bn(ws, gs, bs, x_sum, x_gram, Mf, eps)

    # ---- Sweep B: sum(a1), Gram(a1) -> BN2 statistics (tail masked) --------
    a1sum_p, a1gram_p = pl.pallas_call(
        functools.partial(_stats_a1_kernel, tm=tm, m_total=M),
        out_shape=(jax.ShapeDtypeStruct((splits, ic, 1), _F32),
                   jax.ShapeDtypeStruct((splits, ic, ic), _F32)),
        grid_spec=pltpu.PrefetchScalarGridSpec(
            num_scalar_prefetch=0, grid=(splits, inner),
            in_specs=[x_spec, const2((ic, ic)), const2((ic, 1)),
                      const2((ic, 1))],
            out_specs=[acc_spec(ic, 1), acc_spec(ic, ic)]),
        compiler_params=stats_params,
    )(xt, w1, sc1, sh1)
    a1_sum = jnp.sum(a1sum_p, axis=0)
    a1_gram = jnp.sum(a1gram_p, axis=0)
    sc2, sh2 = _fold_bn(w2, g2, b2, a1_sum, a1_gram, Mf, eps)

    # ---- Sweep C: fused recompute + residual + final relu -------------------
    c1 = lambda shape: pl.BlockSpec(shape, lambda i: (0, 0))
    in_specs = [pl.BlockSpec((ic, tm), lambda i: (0, i)),
                c1((ic, ic)), c1((ic, 1)), c1((ic, 1)),
                c1((oc, ic)), c1((oc, 1)), c1((oc, 1))]
    args = [xt, w1, sc1, sh1, w2, sc2, sh2]
    if has_shortcut:
        in_specs += [c1((oc, ic)), c1((oc, 1)), c1((oc, 1))]
        args += [ws, scs, shs]

    out_t = pl.pallas_call(
        functools.partial(_final_kernel, has_shortcut=has_shortcut),
        out_shape=jax.ShapeDtypeStruct((oc, M_pad), _F32),
        grid_spec=pltpu.PrefetchScalarGridSpec(
            num_scalar_prefetch=0, grid=(n_tiles,),
            in_specs=in_specs,
            out_specs=pl.BlockSpec((oc, tm), lambda i: (0, i))),
        compiler_params=pltpu.CompilerParams(
            dimension_semantics=("parallel",),
            vmem_limit_bytes=_VMEM_LIMIT_BYTES),
    )(*args)

    return out_t[:, :M]


# ----------------------------------------------------------------------------
# Channels-last wrapper matching the PyTorch module interface: (B, N, ic).
# ----------------------------------------------------------------------------
def res_smlp_forward(x, w1, g1, b1, w2, g2, b2, ws=None, gs=None, bs=None, *,
                     eps=1e-5, stat_splits=None):
    B, N, ic = x.shape
    oc = w2.shape[0]
    x_cm = x.reshape(B * N, ic).astype(_F32).T                 # (ic, M)
    out_cm = res_smlp_forward_cm(x_cm, w1, g1, b1, w2, g2, b2, ws, gs, bs,
                                 eps=eps, stat_splits=stat_splits)
    return out_cm.T.reshape(B, N, oc).astype(x.dtype)


# ----------------------------------------------------------------------------
# Pure-JAX reference (mirrors the PyTorch module, training-mode BatchNorm)
# ----------------------------------------------------------------------------
def _smlp_bn_ref(x, w, gamma, beta, eps=1e-5):
    y = jnp.einsum("bni,oi->bno", x.astype(_F32), w.astype(_F32),
                   precision=_HIGHEST)
    mean = jnp.mean(y, axis=(0, 1), keepdims=True)
    var = jnp.mean((y - mean) ** 2, axis=(0, 1), keepdims=True)
    return (y - mean) * lax.rsqrt(var + eps) * gamma.reshape(1, 1, -1) \
        + beta.reshape(1, 1, -1)


def res_smlp_reference(x, w1, g1, b1, w2, g2, b2, ws=None, gs=None, bs=None,
                       eps=1e-5):
    ic = x.shape[-1]
    oc = w2.shape[0]
    a1 = jnp.maximum(_smlp_bn_ref(x, w1, g1, b1, eps), 0.0)
    h2 = _smlp_bn_ref(a1, w2, g2, b2, eps)
    if ic != oc:
        out = jnp.maximum(_smlp_bn_ref(x, ws, gs, bs, eps) + h2, 0.0)
    else:
        out = jnp.maximum(x + h2, 0.0)
    return out.astype(x.dtype)


if __name__ == "__main__":
    def bf16_exact(a):
        # Snap test data to bf16-representable values so the kernel-vs-reference
        # comparison is insensitive to the MXU's matmul pass precision.
        return a.astype(jnp.bfloat16).astype(jnp.float32)

    def make_params(key, ic, oc):
        # Conv2d(ic, oc, 1, bias=False)-like init; BatchNorm2d fresh affine.
        bound = (1.0 / ic) ** 0.5
        w = bf16_exact(jax.random.uniform(key, (oc, ic), jnp.float32,
                                          -bound, bound))
        return w, jnp.ones((oc,), jnp.float32), jnp.zeros((oc,), jnp.float32)

    key = jax.random.PRNGKey(0)
    k = jax.random.split(key, 6)

    # Case 1: ResSMLP(4, 8) -> shortcut SMLP path; M = 1000 exercises the
    # zero-padded tail (and the sweep-B statistics mask).
    B, N, ic, oc = 2, 500, 4, 8
    x = bf16_exact(jax.random.normal(k[0], (B, N, ic), jnp.float32))
    w1, g1, b1 = make_params(k[1], ic, ic)
    w2, g2, b2 = make_params(k[2], ic, oc)
    ws, gs, bs = make_params(k[3], ic, oc)
    out = jax.block_until_ready(
        res_smlp_forward(x, w1, g1, b1, w2, g2, b2, ws, gs, bs))
    ref = res_smlp_reference(x, w1, g1, b1, w2, g2, b2, ws, gs, bs)
    assert out.shape == (B, N, oc)
    err = float(jnp.max(jnp.abs(out - ref)))
    assert err < 5e-4, f"shortcut case: max abs err {err}"

    # Case 2: ResSMLP(8, 8) -> identity-residual path.
    B2, N2, c = 2, 512, 8
    x2 = bf16_exact(jax.random.normal(k[4], (B2, N2, c), jnp.float32))
    kk = jax.random.split(k[5], 2)
    w1b, g1b, b1b = make_params(kk[0], c, c)
    w2b, g2b, b2b = make_params(kk[1], c, c)
    out2 = jax.block_until_ready(
        res_smlp_forward(x2, w1b, g1b, b1b, w2b, g2b, b2b))
    ref2 = res_smlp_reference(x2, w1b, g1b, b1b, w2b, g2b, b2b)
    assert out2.shape == (B2, N2, c)
    err2 = float(jnp.max(jnp.abs(out2 - ref2)))
    assert err2 < 5e-4, f"identity case: max abs err {err2}"

    print("KERNEL_OK")
</pallas_src>

<mosaic_0001>
module attributes {stable_mosaic.version = 11 : i64} {
  func.func @_stats_x_kernel(%arg0: i32, %arg1: i32, %arg2: memref<4x512xf32, #tpu.memory_space<vmem>>, %arg3: memref<1x4x1xf32, #tpu.memory_space<vmem>>, %arg4: memref<1x4x4xf32, #tpu.memory_space<vmem>>) attributes {dimension_semantics = [#tpu.dimension_semantics<parallel>, #tpu.dimension_semantics<arbitrary>], iteration_bounds = array<i64: 1, 2>, scalar_prefetch = 0 : i64, scratch_operands = 0 : i64, tpu.core_type = #tpu.core_type<tc>, window_params = [{transform_indices = @transform_0, window_bounds = array<i64: 4, 512>}, {transform_indices = @transform_1, window_bounds = array<i64: 1, 4, 1>}, {transform_indices = @transform_2, window_bounds = array<i64: 1, 4, 4>}]} {
    %c0_i32 = arith.constant 0 : i32
    %0 = arith.cmpi eq, %arg1, %c0_i32 : i32
    %1 = arith.extui %0 : i1 to i32
    %c0_i32_0 = arith.constant 0 : i32
    %2 = arith.cmpi ne, %1, %c0_i32_0 : i32
    scf.if %2 {
      %cst_15 = arith.constant 0.000000e+00 : f32
      %15 = vector.broadcast %cst_15 : f32 to vector<1x4x1xf32>
      %c0_16 = arith.constant 0 : index
      %c0_17 = arith.constant 0 : index
      %c0_18 = arith.constant 0 : index
      %16 = vector.load %arg3[%c0_16, %c0_17, %c0_18] : memref<1x4x1xf32, #tpu.memory_space<vmem>>, vector<1x4x1xf32>
      tpu.vector_store %arg3[%c0_16, %c0_17, %c0_18], %15 {strides = array<i32>} : memref<1x4x1xf32, #tpu.memory_space<vmem>>, vector<1x4x1xf32>,
      %cst_19 = arith.constant 0.000000e+00 : f32
      %17 = vector.broadcast %cst_19 : f32 to vector<1x4x4xf32>
      %c0_20 = arith.constant 0 : index
      %c0_21 = arith.constant 0 : index
      %c0_22 = arith.constant 0 : index
      %18 = vector.load %arg4[%c0_20, %c0_21, %c0_22] : memref<1x4x4xf32, #tpu.memory_space<vmem>>, vector<1x4x4xf32>
      tpu.vector_store %arg4[%c0_20, %c0_21, %c0_22], %17 {strides = array<i32>} : memref<1x4x4xf32, #tpu.memory_space<vmem>>, vector<1x4x4xf32>,
    } else {
    }
    %c0 = arith.constant 0 : index
    %c0_1 = arith.constant 0 : index
    %3 = vector.load %arg2[%c0, %c0_1] : memref<4x512xf32, #tpu.memory_space<vmem>>, vector<4x512xf32>
    %c0_2 = arith.constant 0 : index
    %c0_3 = arith.constant 0 : index
    %c0_4 = arith.constant 0 : index
    %4 = vector.load %arg3[%c0_2, %c0_3, %c0_4] : memref<1x4x1xf32, #tpu.memory_space<vmem>>, vector<1x4x1xf32>
    %cst = arith.constant dense<0.000000e+00> : vector<4xf32>
    %5 = vector.multi_reduction <add>, %3, %cst [1] : vector<4x512xf32> to vector<4xf32>
    %6 = vector.shape_cast %5 : vector<4xf32> to vector<4x1xf32>
    %7 = vector.shape_cast %6 : vector<4x1xf32> to vector<1x4x1xf32>
    %8 = arith.addf %4, %7 : vector<1x4x1xf32>
    %c0_5 = arith.constant 0 : index
    %c0_6 = arith.constant 0 : index
    %c0_7 = arith.constant 0 : index
    %9 = vector.load %arg3[%c0_5, %c0_6, %c0_7] : memref<1x4x1xf32, #tpu.memory_space<vmem>>, vector<1x4x1xf32>
    tpu.vector_store %arg3[%c0_5, %c0_6, %c0_7], %8 {strides = array<i32>} : memref<1x4x1xf32, #tpu.memory_space<vmem>>, vector<1x4x1xf32>,
    %c0_8 = arith.constant 0 : index
    %c0_9 = arith.constant 0 : index
    %c0_10 = arith.constant 0 : index
    %10 = vector.load %arg4[%c0_8, %c0_9, %c0_10] : memref<1x4x4xf32, #tpu.memory_space<vmem>>, vector<1x4x4xf32>
    %cst_11 = arith.constant dense<0.000000e+00> : vector<4x4xf32>
    %11 = tpu.matmul %3, %3, %cst_11 {dimension_numbers = #tpu.dot_dimension_numbers<[1], [1], [0], [0], [0, 0, 1, 0], [], []>} : vector<4x512xf32>, vector<4x512xf32>, vector<4x4xf32> -> vector<4x4xf32>
    %12 = vector.shape_cast %11 : vector<4x4xf32> to vector<1x4x4xf32>
    %13 = arith.addf %10, %12 : vector<1x4x4xf32>
    %c0_12 = arith.constant 0 : index
    %c0_13 = arith.constant 0 : index
    %c0_14 = arith.constant 0 : index
    %14 = vector.load %arg4[%c0_12, %c0_13, %c0_14] : memref<1x4x4xf32, #tpu.memory_space<vmem>>, vector<1x4x4xf32>
    tpu.vector_store %arg4[%c0_12, %c0_13, %c0_14], %13 {strides = array<i32>} : memref<1x4x4xf32, #tpu.memory_space<vmem>>, vector<1x4x4xf32>,
    return
  }
  func.func @transform_0(%arg0: i32, %arg1: i32) -> (i32, i32) {
    %c2_i32 = arith.constant 2 : i32
    %0 = arith.muli %arg0, %c2_i32 : i32
    %1 = arith.addi %0, %arg1 : i32
    %c0_i32 = arith.constant 0 : i32
    %c0_i32_0 = arith.constant 0 : i32
    return %c0_i32, %1 : i32, i32
  }
  func.func @transform_1(%arg0: i32, %arg1: i32) -> (i32, i32, i32) {
    %c0_i32 = arith.constant 0 : i32
    %c0_i32_0 = arith.constant 0 : i32
    %c0_i32_1 = arith.constant 0 : i32
    return %arg0, %c0_i32, %c0_i32_0 : i32, i32, i32
  }
  func.func @transform_2(%arg0: i32, %arg1: i32) -> (i32, i32, i32) {
    %c0_i32 = arith.constant 0 : i32
    %c0_i32_0 = arith.constant 0 : i32
    %c0_i32_1 = arith.constant 0 : i32
    return %arg0, %c0_i32, %c0_i32_0 : i32, i32, i32
  }
}

</mosaic_0001>

<llo_original>
// kernel: tpu_custom_call.1
$region0: #{tpu_custom_call.1}
  #allocation0 [shape = 'u32[]', space=smem, size = 0x4, offset = 0x4, fixed_abs, tag = 'smem constant byte address 0x4 - core index']
  #allocation1 [shape = 'u32[144,128]{1,0:T(1,128)}', space=vmem, size = 0x12000, scoped, tag = 'internal scratch']
  %s0 = inlined_call_operand.hbm [shape: f32[4,1024], index: 0, kind: input, shape index: {}]
  %s1 = inlined_call_operand.vmem [shape: f32[1,4,1], index: 1, kind: output, shape index: {0}]
  %s2 = inlined_call_operand.hbm [shape: f32[1,4,4], index: 2, kind: output, shape index: {1}]
  %3 = xla_tuple %s1, %s2
  %s4 = sld [smem:[#allocation0]]
  $region53: #{tpu_custom_call.1} parent=0
    _
  %s6 = ssub.s32 1, %s4
  %s7 = scalar_select 0, %s6, %s4
  $region1: #{tpu_custom_call.1} parent=0
    #allocation2 [shape = 'u8[16384]{0}', space=vmem, size = 0x4000, scoped, tag = 'input window, operand 0']
    #allocation3 [shape = 's32[2]{0}', space=sflag, size = 0x8, scoped, tag = 'scoped memory for tpu_custom_call.1']
    #allocation4 [shape = 's32[2]{0}', space=sflag, size = 0x8, scoped, tag = 'scoped memory for tpu_custom_call.1']
    #allocation5 [shape = 'u8[2048]{0}', space=vmem, size = 0x800, scoped, tag = 'output window, operand 1, single buffered']
    %8 = vsyncpa [#allocation3], 0
    %s9 = scalar_lea.sflag [#allocation3], 1
    %10 = vsyncpa %s9, 0
    %11 = vsyncpa [#allocation4], 0
    loop: start=0, step=1, limit=4
    $region2: #{tpu_custom_call.1} parent=1 // loop_pre_header
      _
    $region3: #{tpu_custom_call.1} parent=1 // loop_header
      %s13 = sphi 0, %s17
      %p14 = scmp.ge.s32.totalorder %s13, 4
      %s20 = sphi 0, %s32
      %s21 = sphi 0, %s28
      %s22 = sphi 0, %s20
      %s23 = sphi 0, %s21
      %s24 = sphi 0, %s22
      %s25 = sphi 0, %s23
      %s39 = sphi 0, %s41
      %s42 = sphi 0, %s39
      %s43 = sphi 0, %s42
      %s59 = sphi 0, %s43
      %s65 = sphi 0, %s67
      %s68 = sphi 0, %s65
      %s69 = sphi 0, %s68
      %s85 = sphi 0, %s69
      %s91 = sphi 0, %s93
      %s94 = sphi 0, %s91
      %s95 = sphi 0, %s94
      %s111 = sphi 0, %s95
    $region4: #{tpu_custom_call.1} parent=1 // loop_header_branch
      %16 = sbr.rel (%p14) target = $region8
    $region5: #{tpu_custom_call.1} parent=1 // loop_body
      %s18 = ssub.s32 %s13, 1
      %s19 = ssub.s32 %s13, 2
      %s26 = sadd.s32 1, %s21
      %p27 = scmp.ge.s32.totalorder %s26, 2
      %s28 = scalar_select %p27, 0, %s26
      %s29 = sadd.s32 1, %s20
      %s30 = scalar_select %p27, %s29, %s20
      %p31 = scmp.ge.s32.totalorder %s30, 1
      %s32 = scalar_select %p31, 0, %s30
      %s33 = smul.u32 %s20, 2
      %s34 = sadd.s32 %s33, %s21
      %s35 = smul.u32 %s32, 2
      %s36 = sadd.s32 %s35, %s28
      %s37 = ssub.s32 %s34, %s36
      %p38 = scmp.eq.s32.totalorder %s37, 0
      %s40 = sadd.s32 %s39, 1
      %s41 = scalar_select %p38, %s39, %s40
      %p44 = pneg %p38
      %p45 = scmp.eq.s32.totalorder %s13, 1
      %p46 = por %p44, %p45
      %p47 = scmp.ne.s32.totalorder %s39, %s42
      %p48 = scmp.eq.s32.totalorder %s13, 0
      %p49 = por %p47, %p48
      %p50 = scmp.ne.s32.totalorder %s39, %s42
      %p51 = scmp.eq.s32.totalorder %s18, 1
      %p52 = por %p50, %p51
      %p53 = scmp.ne.s32.totalorder %s42, %s43
      %p54 = scmp.eq.s32.totalorder %s18, 0
      %p55 = por %p53, %p54
      %p56 = scmp.ne.s32.totalorder %s42, %s43
      %p57 = scmp.eq.s32.totalorder %s19, 1
      %p58 = por %p56, %p57
      %p60 = scmp.ne.s32.totalorder %s43, %s59
      %p61 = scmp.eq.s32.totalorder %s19, 0
      %p62 = por %p60, %p61
      %s63 = ssub.s32 %s20, %s32
      %p64 = scmp.eq.s32.totalorder %s63, 0
      %s66 = sadd.s32 %s65, 1
      %s67 = scalar_select %p64, %s65, %s66
      %p70 = pneg %p64
      %p71 = scmp.eq.s32.totalorder %s13, 1
      %p72 = por %p70, %p71
      %p73 = scmp.ne.s32.totalorder %s65, %s68
      %p74 = scmp.eq.s32.totalorder %s13, 0
      %p75 = por %p73, %p74
      %p76 = scmp.ne.s32.totalorder %s65, %s68
      %p77 = scmp.eq.s32.totalorder %s18, 1
      %p78 = por %p76, %p77
      %p79 = scmp.ne.s32.totalorder %s68, %s69
      %p80 = scmp.eq.s32.totalorder %s18, 0
      %p81 = por %p79, %p80
      %p82 = scmp.ne.s32.totalorder %s68, %s69
      %p83 = scmp.eq.s32.totalorder %s19, 1
      %p84 = por %p82, %p83
      %p86 = scmp.ne.s32.totalorder %s69, %s85
      %p87 = scmp.eq.s32.totalorder %s19, 0
      %p88 = por %p86, %p87
      %s89 = ssub.s32 %s20, %s32
      %p90 = scmp.eq.s32.totalorder %s89, 0
      %s92 = sadd.s32 %s91, 1
      %s93 = scalar_select %p90, %s91, %s92
      %p96 = pneg %p90
      %p97 = scmp.eq.s32.totalorder %s13, 1
      %p98 = por %p96, %p97
      %p99 = scmp.ne.s32.totalorder %s91, %s94
      %p100 = scmp.eq.s32.totalorder %s13, 0
      %p101 = por %p99, %p100
      %p102 = scmp.ne.s32.totalorder %s91, %s94
      %p103 = scmp.eq.s32.totalorder %s18, 1
      %p104 = por %p102, %p103
      %p105 = scmp.ne.s32.totalorder %s94, %s95
      %p106 = scmp.eq.s32.totalorder %s18, 0
      %p107 = por %p105, %p106
      %p108 = scmp.ne.s32.totalorder %s94, %s95
      %p109 = scmp.eq.s32.totalorder %s19, 1
      %p110 = por %p108, %p109
      %p112 = scmp.ne.s32.totalorder %s95, %s111
      %p113 = scmp.eq.s32.totalorder %s19, 0
      %p114 = por %p112, %p113
      %p115 = scmp.le.s32.totalorder 1, %s13
      %p116 = scmp.lt.s32.totalorder %s13, 3
      %p117 = pnand %p115, %p116
      %p118 = pneg %p117
      // Predicated region
      $region9: #{tpu_custom_call.1} parent=5 // pred_check
        _
      $region10: #{tpu_custom_call.1} parent=5 // pred_check_branch
        %120 = sbr.rel (%p117) target = $region12
      $region11: #{tpu_custom_call.1} parent=5 // pred_region
        %s121 = ssub.s32 %s13, 1
      $region12: #{tpu_custom_call.1} parent=5 // pred_fallthru
        _
      %p122 = scmp.lt.s32.totalorder %s13, 2
      // Predicated region
      $region13: #{tpu_custom_call.1} parent=5 // pred_check
        %p123 = pneg %p122
      $region14: #{tpu_custom_call.1} parent=5 // pred_check_branch
        %125 = sbr.rel (%p123) target = $region16
      $region15: #{tpu_custom_call.1} parent=5 // pred_region
        // Predicated region
        $region17: #{tpu_custom_call.1} parent=15 // pred_check
          %p126 = pneg %p49
        $region18: #{tpu_custom_call.1} parent=15 // pred_check_branch
          %128 = sbr.rel (%p126) target = $region20
        $region19: #{tpu_custom_call.1} parent=15 // pred_region
          %s129 = sand.u32 %s39, 1
          %s130 = scalar_lea.sflag [#allocation3], %s129
          %s131 = sand.u32 %s39, 1
          %s132 = smul.addr %s131, 16
          %s133 = scalar_lea.vmem [#allocation2], %s132
          %s134 = smul.u32 %s20, 2
          %s135 = sadd.s32 %s134, %s21
          %s136 = smul.u32 4, %s135
          %s138 = ssub.s32 256, 256
          %139 = vsyncadd %s130, %s138
          %s140 = smul.addr %s136, 64
          %s141 = scalar_lea.hbm %s0, %s140
          %s143 = sshll.u32 %s133, 4
          %s144 = int_to_ptr.vmem [resolvable:$true] %s143
          %146 = dma.hbm_to_vmem [thread:$0]  %s141, 256, %s144, %s130
        $region20: #{tpu_custom_call.1} parent=15 // pred_fallthru
          _
      $region16: #{tpu_custom_call.1} parent=5 // pred_fallthru
        _
      %p147 = scmp.le.s32.totalorder 1, %s13
      %p148 = scmp.lt.s32.totalorder %s13, 3
      %p149 = pnand %p147, %p148
      %p150 = pneg %p149
      // Predicated region
      $region21: #{tpu_custom_call.1} parent=5 // pred_check
        _
      $region22: #{tpu_custom_call.1} parent=5 // pred_check_branch
        %152 = sbr.rel (%p149) target = $region24
      $region23: #{tpu_custom_call.1} parent=5 // pred_region
        %s153 = ssub.s32 %s13, 1
        %s154 = sand.u32 %s42, 1
        %s155 = scalar_lea.sflag [#allocation3], %s154
        %s156 = sand.u32 %s42, 1
        %s157 = smul.addr %s156, 16
        %s158 = scalar_lea.vmem [#allocation2], %s157
        // Predicated region
        $region25: #{tpu_custom_call.1} parent=23 // pred_check
          %p159 = pneg %p55
        $region26: #{tpu_custom_call.1} parent=23 // pred_check_branch
          %161 = sbr.rel (%p159) target = $region28
        $region27: #{tpu_custom_call.1} parent=23 // pred_region
          %162 = dma.done %s155, 256
        $region28: #{tpu_custom_call.1} parent=23 // pred_fallthru
          _
        %s163 = sand.u32 %s42, 1
        %s164 = scalar_lea.sflag [#allocation3], %s163
        %s165 = sand.u32 %s42, 1
        %s166 = smul.addr %s165, 16
        %s167 = scalar_lea.vmem [#allocation2], %s166
        %p168 = pneg %p55
        %p169 = pneg %p52
        %p170 = pneg %p81
        %p171 = pneg %p78
        %p172 = scmp.lt.s32.totalorder %s22, 0
        %s173 = scalar_select %p172, %s22, 0
        %s174 = smul.addr %s173, 4
        %s175 = scalar_lea.vmem %s1, %s174
        %p176 = pneg %p107
        %p177 = pneg %p104
        %s178 = smul.u32 %s22, 2
        %s179 = sadd.s32 %s178, %s23
        %s180 = smul.u32 4, %s179
        %p181 = scmp.lt.s32.totalorder %s22, 0
        %s182 = scalar_select %p181, %s22, 0
        %s183 = smul.addr %s182, 4
        %s184 = scalar_lea.vmem %s1, %s183
        %p185 = scmp.eq.s32.totalorder %s23, 0
        // Predicated region
        $region29: #{tpu_custom_call.1} parent=23 // pred_check
          %p186 = pneg %p185
        $region30: #{tpu_custom_call.1} parent=23 // pred_check_branch
          %188 = sbr.rel (%p186) target = $region32
        $region31: #{tpu_custom_call.1} parent=23 // pred_region
          %vm189 = vcmask 3072
          %190 = vst.msk [vmem:[%s184] sm:$0xf] %vm189, 0.0
          %vm191 = vcmask 27648
          %192 = vst.msk [vmem:[#allocation5] sm:$0xf] %vm191, 0.0
        $region32: #{tpu_custom_call.1} parent=23 // pred_fallthru
          _
        %v193 = vld [vmem:[%s158] sm:$0xff]
        %v194 = vld [vmem:[%s158 + $0x8] sm:$0xff]
        %v195 = vld [vmem:[%s184] sm:$0xf]
        %v198 = vcombine.high %v193, %v193
        %v199 = vcombine.high %v194, %v194
        %vm202 = vcmask 1043456
        %v203 = vsel %vm202, %v193, 0.0
        %v204 = vsel %vm202, %v198, 0.0
        %v205 = vadd.f32 %v203, %v204
        %v206 = vsel %vm202, %v194, 0.0
        %v207 = vadd.f32 %v205, %v206
        %v208 = vsel %vm202, %v199, 0.0
        %v209 = vadd.f32 %v207, %v208
        %210 = vadd.xlane.f32.xlu0 %v209
        %v211 = vpop.xlane.xlu0 %210
        %v212 = vadd.f32 %v195, %v211
        %vm213 = vcmask 3072
        %214 = vst.msk [vmem:[%s184] sm:$0xf] %vm213, %v212
        %v215 = vld [vmem:[#allocation5] sm:$0xf]
        %216 = vmatprep.subr.mxu0 %v198
        %217 = vmatpush1.xpose.msra.mxu0 %v193
        %218 = vmatprep.subr.mxu0 0.0
        %219 = vmatpush1.xpose.msra.mxu0 0.0
        %220 = vmatprep.subr.mxu0 0.0
        %221 = vmatpush1.xpose.msra.mxu0 0.0
        %222 = vmatprep.subr.mxu0 0.0
        %223 = vmatpush1.xpose.msra.mxu0 0.0
        %224 = vmatprep.subr.mxu0 0.0
        %225 = vmatpush1.xpose.msra.mxu0 0.0
        %226 = vmatprep.subr.mxu0 0.0
        %227 = vmatpush1.xpose.msra.mxu0 0.0
        %228 = vmatprep.subr.mxu0 0.0
        %229 = vmatpush1.xpose.msra.mxu0 0.0
        %230 = vmatprep.subr.mxu0 0.0
        %231 = vmatpush1.xpose.msra.mxu0 0.0
        %232 = vmatprep.subr.mxu0 0.0
        %233 = vmatpush1.xpose.msra.mxu0 0.0
        %234 = vmatprep.subr.mxu0 0.0
        %235 = vmatpush1.xpose.msra.mxu0 0.0
        %236 = vmatprep.subr.mxu0 0.0
        %237 = vmatpush1.xpose.msra.mxu0 0.0
        %238 = vmatprep.subr.mxu0 0.0
        %239 = vmatpush1.xpose.msra.mxu0 0.0
        %240 = vmatprep.subr.mxu0 0.0
        %241 = vmatpush1.xpose.msra.mxu0 0.0
        %242 = vmatprep.subr.mxu0 0.0
        %243 = vmatpush1.xpose.msra.mxu0 0.0
        %244 = vmatprep.subr.mxu0 0.0
        %245 = vmatpush1.xpose.msra.mxu0 0.0
        %246 = vmatprep.subr.mxu0 0.0
        %247 = vmatpush1.xpose.msra.mxu0 0.0
        %248 = vmatprep.subr.mxu0 0.0
        %249 = vmatpush1.xpose.msra.mxu0 0.0
        %250 = vmatprep.subr.mxu0 0.0
        %251 = vmatpush1.xpose.msra.mxu0 0.0
        %252 = vmatprep.subr.mxu0 0.0
        %253 = vmatpush1.xpose.msra.mxu0 0.0
        %254 = vmatprep.subr.mxu0 0.0
        %255 = vmatpush1.xpose.msra.mxu0 0.0
        %256 = vmatprep.subr.mxu0 0.0
        %257 = vmatpush1.xpose.msra.mxu0 0.0
        %258 = vmatprep.subr.mxu0 0.0
        %259 = vmatpush1.xpose.msra.mxu0 0.0
        %260 = vmatprep.subr.mxu0 0.0
        %261 = vmatpush1.xpose.msra.mxu0 0.0
        %262 = vmatprep.subr.mxu0 0.0
        %263 = vmatpush1.xpose.msra.mxu0 0.0
        %264 = vmatprep.subr.mxu0 0.0
        %265 = vmatpush1.xpose.msra.mxu0 0.0
        %266 = vmatprep.subr.mxu0 0.0
        %267 = vmatpush1.xpose.msra.mxu0 0.0
        %268 = vmatprep.subr.mxu0 0.0
        %269 = vmatpush1.xpose.msra.mxu0 0.0
        %270 = vmatprep.subr.mxu0 0.0
        %271 = vmatpush1.xpose.msra.mxu0 0.0
        %272 = vmatprep.subr.mxu0 0.0
        %273 = vmatpush1.xpose.msra.mxu0 0.0
        %274 = vmatprep.subr.mxu0 0.0
        %275 = vmatpush1.xpose.msra.mxu0 0.0
        %276 = vmatprep.subr.mxu0 0.0
        %277 = vmatpush1.xpose.msra.mxu0 0.0
        %278 = vmatprep.subr.mxu0 0.0
        %279 = vmatpush1.xpose.msra.mxu0 0.0
        %280 = vmatprep.mubr.f32.mxu0 %v198
        %281 = vmatmul.mubr.f32.gmra.mrb[0].mxu0 %v193
        %v282 = vpop.f32.mrb[0].mxu0
        %v283 = vadd.f32 0.0, %v282
        %v284 = vpop.f32.mrb[0].mxu0
        %285 = vdwg.mxu0
        %286 = vmatprep.subr.mxu0 %v199
        %287 = vmatpush1.xpose.msra.mxu0 %v194
        %288 = vmatprep.subr.mxu0 0.0
        %289 = vmatpush1.xpose.msra.mxu0 0.0
        %290 = vmatprep.subr.mxu0 0.0
        %291 = vmatpush1.xpose.msra.mxu0 0.0
        %292 = vmatprep.subr.mxu0 0.0
        %293 = vmatpush1.xpose.msra.mxu0 0.0
        %294 = vmatprep.subr.mxu0 0.0
        %295 = vmatpush1.xpose.msra.mxu0 0.0
        %296 = vmatprep.subr.mxu0 0.0
        %297 = vmatpush1.xpose.msra.mxu0 0.0
        %298 = vmatprep.subr.mxu0 0.0
        %299 = vmatpush1.xpose.msra.mxu0 0.0
        %300 = vmatprep.subr.mxu0 0.0
        %301 = vmatpush1.xpose.msra.mxu0 0.0
        %302 = vmatprep.subr.mxu0 0.0
        %303 = vmatpush1.xpose.msra.mxu0 0.0
        %304 = vmatprep.subr.mxu0 0.0
        %305 = vmatpush1.xpose.msra.mxu0 0.0
        %306 = vmatprep.subr.mxu0 0.0
        %307 = vmatpush1.xpose.msra.mxu0 0.0
        %308 = vmatprep.subr.mxu0 0.0
        %309 = vmatpush1.xpose.msra.mxu0 0.0
        %310 = vmatprep.subr.mxu0 0.0
        %311 = vmatpush1.xpose.msra.mxu0 0.0
        %312 = vmatprep.subr.mxu0 0.0
        %313 = vmatpush1.xpose.msra.mxu0 0.0
        %314 = vmatprep.subr.mxu0 0.0
        %315 = vmatpush1.xpose.msra.mxu0 0.0
        %316 = vmatprep.subr.mxu0 0.0
        %317 = vmatpush1.xpose.msra.mxu0 0.0
        %318 = vmatprep.subr.mxu0 0.0
        %319 = vmatpush1.xpose.msra.mxu0 0.0
        %320 = vmatprep.subr.mxu0 0.0
        %321 = vmatpush1.xpose.msra.mxu0 0.0
        %322 = vmatprep.subr.mxu0 0.0
        %323 = vmatpush1.xpose.msra.mxu0 0.0
        %324 = vmatprep.subr.mxu0 0.0
        %325 = vmatpush1.xpose.msra.mxu0 0.0
        %326 = vmatprep.subr.mxu0 0.0
        %327 = vmatpush1.xpose.msra.mxu0 0.0
        %328 = vmatprep.subr.mxu0 0.0
        %329 = vmatpush1.xpose.msra.mxu0 0.0
        %330 = vmatprep.subr.mxu0 0.0
        %331 = vmatpush1.xpose.msra.mxu0 0.0
        %332 = vmatprep.subr.mxu0 0.0
        %333 = vmatpush1.xpose.msra.mxu0 0.0
        %334 = vmatprep.subr.mxu0 0.0
        %335 = vmatpush1.xpose.msra.mxu0 0.0
        %336 = vmatprep.subr.mxu0 0.0
        %337 = vmatpush1.xpose.msra.mxu0 0.0
        %338 = vmatprep.subr.mxu0 0.0
        %339 = vmatpush1.xpose.msra.mxu0 0.0
        %340 = vmatprep.subr.mxu0 0.0
        %341 = vmatpush1.xpose.msra.mxu0 0.0
        %342 = vmatprep.subr.mxu0 0.0
        %343 = vmatpush1.xpose.msra.mxu0 0.0
        %344 = vmatprep.subr.mxu0 0.0
        %345 = vmatpush1.xpose.msra.mxu0 0.0
        %346 = vmatprep.subr.mxu0 0.0
        %347 = vmatpush1.xpose.msra.mxu0 0.0
        %348 = vmatprep.subr.mxu0 0.0
        %349 = vmatpush1.xpose.msra.mxu0 0.0
        %350 = vmatprep.mubr.f32.mxu0 %v199
        %351 = vmatmul.mubr.f32.gmra.mrb[0].mxu0 %v194
        %v352 = vpop.f32.mrb[0].mxu0
        %v353 = vadd.f32 %v283, %v352
        %v354 = vpop.f32.mrb[0].mxu0
        %355 = vdwg.mxu0
        %v356 = vadd.f32 %v215, %v353
        %vm357 = vcmask 27648
        %358 = vst.msk [vmem:[#allocation5] sm:$0xf] %vm357, %v356
        %p359 = scmp.lt.s32.totalorder %s22, 0
        %s360 = scalar_select %p359, %s22, 0
        %s361 = smul.addr %s360, 4
        %s362 = scalar_lea.vmem %s1, %s361
        // Predicated region
        $region33: #{tpu_custom_call.1} parent=23 // pred_check
          %p363 = pneg %p78
        $region34: #{tpu_custom_call.1} parent=23 // pred_check_branch
          %365 = sbr.rel (%p363) target = $region36
        $region35: #{tpu_custom_call.1} parent=23 // pred_region
          _
        $region36: #{tpu_custom_call.1} parent=23 // pred_fallthru
          _
        // Predicated region
        $region37: #{tpu_custom_call.1} parent=23 // pred_check
          %p366 = pneg %p104
        $region38: #{tpu_custom_call.1} parent=23 // pred_check_branch
          %368 = sbr.rel (%p366) target = $region40
        $region39: #{tpu_custom_call.1} parent=23 // pred_region
          %s370 = ssub.s32 64, 64
          %371 = vsyncadd [#allocation4], %s370
          %s372 = smul.addr %s22, 64
          %s373 = scalar_lea.hbm %s2, %s372
          %s375 = sshll.u32 [#allocation5], 4
          %s376 = int_to_ptr.vmem [resolvable:$true] %s375
          %378 = dma.vmem_to_hbm [thread:$0]  %s376, 64, %s373, [#allocation4]
        $region40: #{tpu_custom_call.1} parent=23 // pred_fallthru
          _
        // Predicated region
        $region41: #{tpu_custom_call.1} parent=23 // pred_check
          %p379 = pneg %p78
        $region42: #{tpu_custom_call.1} parent=23 // pred_check_branch
          %381 = sbr.rel (%p379) target = $region44
        $region43: #{tpu_custom_call.1} parent=23 // pred_region
          %p382 = scmp.lt.s32.totalorder %s22, 0
          %s383 = scalar_select %p382, %s22, 0
          %s384 = smul.addr %s383, 4
          %s385 = scalar_lea.vmem %s1, %s384
        $region44: #{tpu_custom_call.1} parent=23 // pred_fallthru
          _
        // Predicated region
        $region45: #{tpu_custom_call.1} parent=23 // pred_check
          %p386 = pneg %p104
        $region46: #{tpu_custom_call.1} parent=23 // pred_check_branch
          %388 = sbr.rel (%p386) target = $region48
        $region47: #{tpu_custom_call.1} parent=23 // pred_region
          %389 = dma.done [#allocation4], 64
        $region48: #{tpu_custom_call.1} parent=23 // pred_fallthru
          _
      $region24: #{tpu_custom_call.1} parent=5 // pred_fallthru
        _
      %p390 = scmp.le.s32.totalorder 2, %s13
      // Predicated region
      $region49: #{tpu_custom_call.1} parent=5 // pred_check
        %p391 = pneg %p390
      $region50: #{tpu_custom_call.1} parent=5 // pred_check_branch
        %393 = sbr.rel (%p391) target = $region52
      $region51: #{tpu_custom_call.1} parent=5 // pred_region
        %s394 = ssub.s32 %s13, 2
      $region52: #{tpu_custom_call.1} parent=5 // pred_fallthru
        _
    $region6: #{tpu_custom_call.1} parent=1 // loop_footer
      %s17 = sadd.s32 1, %s13
    $region7: #{tpu_custom_call.1} parent=1 // loop_footer_branch
      %12 = sbr.rel target = $region3
    $region8: #{tpu_custom_call.1} parent=1 // loop_exit
      _
    %395 = vsyncpa [#allocation3], 1
    %s396 = scalar_lea.sflag [#allocation3], 1
    %397 = vsyncpa %s396, 1
    %398 = vsyncpa [#allocation4], 1
    %s399 = scalar_lea.sflag [#allocation4], 1
    %400 = vsyncpa %s399, 1

</llo_original>
